<compile_context>
chip_gen: v6e
topology: v6e:2x2x1
jax: 0.10.0
libtpu: 0.0.40
codegen_flags: <defaults>
</compile_context>

<pallas_src>
import math

import jax
import jax.numpy as jnp
from jax.experimental import pallas as pl
from jax.experimental.pallas import tpu as pltpu


_LANES = 128
_VMEM_PIPELINE_BUDGET = 16 * 1024 * 1024   # bytes for double-buffered tiles (v5e-safe)
_VMEM_LIMIT_BYTES = 32 * 1024 * 1024       # explicit scoped-VMEM limit (ok on v5e/v6e/v7x)
_BLOCK_BYTES_CAP = 4 * 1024 * 1024         # ~2-4 MiB/array is the HBM-roofline sweet spot
_MIN_GRID_STEPS = 8                        # >= ~4 steps per TensorCore on v7x


# ----------------------------------------------------------------------------
# Kernel
# ----------------------------------------------------------------------------
def _weighted_sum_kernel(p_ref, *refs):
    """Scale-accumulate: refs = n input tiles (TM, C) + output tile (TM, C).

    p_ref : (n,) softmax probabilities living in SMEM, read as scalars.
    """
    in_refs, o_ref = refs[:-1], refs[-1]
    acc = in_refs[0][...].astype(jnp.float32) * p_ref[0]
    for t in range(1, len(in_refs)):
        acc = acc + in_refs[t][...].astype(jnp.float32) * p_ref[t]
    o_ref[...] = acc.astype(o_ref.dtype)


# ----------------------------------------------------------------------------
# Wrapper helpers
# ----------------------------------------------------------------------------
def _pick_layout(size):
    """Lane-dense (rows, cols, padded_size); cols is always a multiple of 128."""
    if size % _LANES == 0 and size > 0:
        for c in (1024, 512, 256, 128):     # prefer wide, 128-aligned lanes
            if size % c == 0:
                return size // c, c, size   # no padding needed
    padded = max(((size + _LANES - 1) // _LANES) * _LANES, _LANES)
    return padded // _LANES, _LANES, padded


def _choose_tile_rows(rows, cols, n_inputs, dtype_bytes):
    """Adaptive row-tile: VMEM budget, block-size sweet spot, grid occupancy."""
    mult = 8 if dtype_bytes >= 4 else (16 if dtype_bytes == 2 else 32)
    if rows <= mult:
        return rows                          # single full-extent block
    # (n inputs + 1 output), double-buffered blocks of (tm, cols).
    per_row = (n_inputs + 1) * 2 * cols * dtype_bytes
    tm_budget = max(_VMEM_PIPELINE_BUDGET // per_row, mult)
    tm_occupancy = max(rows // _MIN_GRID_STEPS, mult)   # keep >= ~8 grid steps
    tm_cap = max(_BLOCK_BYTES_CAP // (cols * dtype_bytes), mult)
    tm = min(tm_budget, tm_occupancy, tm_cap, rows)
    return max((tm // mult) * mult, mult)


# ----------------------------------------------------------------------------
# Wrapper
# ----------------------------------------------------------------------------
def weighted_sum(weights, inputs):
    """out = sum_i softmax(weights)[i] * inputs[i]  (all inputs same shape)."""
    inputs = list(inputs)
    n = len(inputs)
    shape = inputs[0].shape
    dtype = inputs[0].dtype
    size = int(math.prod(shape)) if len(shape) else 1
    dtype_bytes = jnp.dtype(dtype).itemsize

    # Softmax over the n learned scalars, computed once (n is tiny).
    probs = jax.nn.softmax(weights.astype(jnp.float32)).reshape(n)

    rows, cols, padded = _pick_layout(size)

    def to2d(x):
        flat = x.reshape(-1)
        if padded != size:
            flat = jnp.pad(flat, (0, padded - size))   # one-time pad -> dense 128 lanes
        return flat.reshape(rows, cols)

    x2d = [to2d(x) for x in inputs]

    tm = _choose_tile_rows(rows, cols, n, dtype_bytes)
    grid = (pl.cdiv(rows, tm),)

    in_specs = [pl.BlockSpec(memory_space=pltpu.MemorySpace.SMEM)]   # probs (n,) in SMEM
    in_specs += [pl.BlockSpec((tm, cols), lambda i: (i, 0)) for _ in range(n)]

    cost = pl.CostEstimate(
        flops=2 * n * padded,
        transcendentals=0,
        bytes_accessed=(n + 1) * padded * dtype_bytes,
    )

    out2d = pl.pallas_call(
        _weighted_sum_kernel,
        grid=grid,
        in_specs=in_specs,
        out_specs=pl.BlockSpec((tm, cols), lambda i: (i, 0)),
        out_shape=jax.ShapeDtypeStruct((rows, cols), dtype),
        compiler_params=pltpu.CompilerParams(
            dimension_semantics=("parallel",),       # megacore-shardable on v7x
            vmem_limit_bytes=_VMEM_LIMIT_BYTES,
        ),
        cost_estimate=cost,
    )(probs, *x2d)

    out = out2d.reshape(-1)
    if padded != size:
        out = out[:size]
    return out.reshape(shape)


# ----------------------------------------------------------------------------
# Driver
# ----------------------------------------------------------------------------
if __name__ == "__main__":
    num_inputs = 2
    root = jax.random.PRNGKey(0)
    kw, k1, k2, k3, k4, k5, k6 = jax.random.split(root, 7)

    fwd = jax.jit(lambda w, xs: weighted_sum(w, xs))

    def reference(wv, xs):
        p = jax.nn.softmax(wv.astype(jnp.float32))
        return sum(p[i] * xs[i] for i in range(len(xs)))

    # PyTorch init: nn.Parameter(torch.ones(num_inputs)).
    w_init = jnp.ones((num_inputs,), jnp.float32)

    # Case 1: small (batch, feature) branch outputs, as the parent model uses.
    a = jax.random.normal(k1, (2, 64), jnp.float32)
    b = jax.random.normal(k2, (2, 64), jnp.float32)
    o1 = fwd(w_init, [a, b])

    # Case 2: larger tensor -> lane-dense reshape + multi-step parallel grid.
    w_rand = jax.random.normal(kw, (num_inputs,), jnp.float32)
    c = jax.random.normal(k3, (8, 64, 256), jnp.float32)
    d = jax.random.normal(k4, (8, 64, 256), jnp.float32)
    o2 = fwd(w_rand, [c, d])

    # Case 3: element count not a multiple of 128 -> pad-to-128-lane fallback.
    e = jax.random.normal(k5, (3, 50), jnp.float32)
    f = jax.random.normal(k6, (3, 50), jnp.float32)
    o3 = fwd(w_rand, [e, f])

    o1, o2, o3 = jax.block_until_ready((o1, o2, o3))

    assert o1.shape == (2, 64) and o1.dtype == jnp.float32
    assert o2.shape == (8, 64, 256) and o2.dtype == jnp.float32
    assert o3.shape == (3, 50) and o3.dtype == jnp.float32
    assert jnp.allclose(o1, reference(w_init, [a, b]), atol=1e-5, rtol=1e-5)
    assert jnp.allclose(o2, reference(w_rand, [c, d]), atol=1e-5, rtol=1e-5)
    assert jnp.allclose(o3, reference(w_rand, [e, f]), atol=1e-5, rtol=1e-5)
    print("KERNEL_OK")
</pallas_src>

<mosaic_0001>
module attributes {stable_mosaic.version = 11 : i64} {
  func.func @_weighted_sum_kernel(%arg0: i32, %arg1: memref<2xf32, #tpu.memory_space<smem>>, %arg2: memref<1x128xf32, #tpu.memory_space<vmem>>, %arg3: memref<1x128xf32, #tpu.memory_space<vmem>>, %arg4: memref<1x128xf32, #tpu.memory_space<vmem>>) attributes {dimension_semantics = [#tpu.dimension_semantics<parallel>], iteration_bounds = array<i64: 1>, scalar_prefetch = 0 : i64, scratch_operands = 0 : i64, tpu.core_type = #tpu.core_type<tc>, window_params = [{transform_indices = @transform_0, window_bounds = array<i64: 2>}, {transform_indices = @transform_1, window_bounds = array<i64: 1, 128>}, {transform_indices = @transform_2, window_bounds = array<i64: 1, 128>}, {transform_indices = @transform_3, window_bounds = array<i64: 1, 128>}]} {
    %c0 = arith.constant 0 : index
    %c0_0 = arith.constant 0 : index
    %0 = vector.load %arg2[%c0, %c0_0] : memref<1x128xf32, #tpu.memory_space<vmem>>, vector<1x128xf32>
    %c0_1 = arith.constant 0 : index
    %1 = memref.load %arg1[%c0_1] : memref<2xf32, #tpu.memory_space<smem>>
    %2 = vector.broadcast %1 : f32 to vector<1x128xf32>
    %3 = arith.mulf %0, %2 : vector<1x128xf32>
    %c0_2 = arith.constant 0 : index
    %c0_3 = arith.constant 0 : index
    %4 = vector.load %arg3[%c0_2, %c0_3] : memref<1x128xf32, #tpu.memory_space<vmem>>, vector<1x128xf32>
    %c1 = arith.constant 1 : index
    %5 = memref.load %arg1[%c1] : memref<2xf32, #tpu.memory_space<smem>>
    %6 = vector.broadcast %5 : f32 to vector<1x128xf32>
    %7 = arith.mulf %4, %6 : vector<1x128xf32>
    %8 = arith.addf %3, %7 : vector<1x128xf32>
    %c0_4 = arith.constant 0 : index
    %c0_5 = arith.constant 0 : index
    %9 = vector.load %arg4[%c0_4, %c0_5] : memref<1x128xf32, #tpu.memory_space<vmem>>, vector<1x128xf32>
    tpu.vector_store %arg4[%c0_4, %c0_5], %8 {strides = array<i32>} : memref<1x128xf32, #tpu.memory_space<vmem>>, vector<1x128xf32>,
    return
  }
  func.func @transform_0(%arg0: i32) -> i32 {
    %c0_i32 = arith.constant 0 : i32
    %c0_i32_0 = arith.constant 0 : i32
    return %c0_i32 : i32
  }
  func.func @transform_1(%arg0: i32) -> (i32, i32) {
    %c0_i32 = arith.constant 0 : i32
    %c0_i32_0 = arith.constant 0 : i32
    return %arg0, %c0_i32 : i32, i32
  }
  func.func @transform_2(%arg0: i32) -> (i32, i32) {
    %c0_i32 = arith.constant 0 : i32
    %c0_i32_0 = arith.constant 0 : i32
    return %arg0, %c0_i32 : i32, i32
  }
  func.func @transform_3(%arg0: i32) -> (i32, i32) {
    %c0_i32 = arith.constant 0 : i32
    %c0_i32_0 = arith.constant 0 : i32
    return %arg0, %c0_i32 : i32, i32
  }
}

</mosaic_0001>

<llo_original>
// kernel: _lambda_.1
$region0: #{_lambda_.1}
  #allocation0 [shape = 'u32[]', space=smem, size = 0x4, offset = 0x4, fixed_abs, tag = 'smem constant byte address 0x4 - core index']
  #allocation1 [shape = 'u32[144,128]{1,0:T(1,128)}', space=vmem, size = 0x12000, scoped, tag = 'internal scratch']
  %s0 = inlined_call_operand.vmem [shape: f32[2], index: 0, kind: input, shape index: {}]
  %s1 = inlined_call_operand.vmem [shape: f32[1,128], index: 1, kind: input, shape index: {}]
  %s2 = inlined_call_operand.vmem [shape: f32[1,128], index: 2, kind: input, shape index: {}]
  %s3 = inlined_call_operand.vmem [shape: f32[1,128], index: 3, kind: output, shape index: {}]
  %s4 = sld [smem:[#allocation0]]
  $region26: #{_lambda_.1} parent=0
    _
  %s6 = ssub.s32 1, %s4
  %s7 = scalar_select 0, %s6, %s4
  $region1: #{_lambda_.1} parent=0
    #allocation2 [shape = 'u8[512]{0}', space=smem, size = 0x200, scoped, tag = 'input window, operand 0, single buffered']
    #allocation3 [shape = 's32[1]{0}', space=sflag, size = 0x4, scoped, tag = 'scoped memory for _lambda_.1']
    %8 = vsyncpa [#allocation3], 0
    // Predicated region
    $region2: #{_lambda_.1} parent=1 // pred_check
      _
    $region3: #{_lambda_.1} parent=1 // pred_check_branch
      %10 = sbr.rel (0) target = $region5
    $region4: #{_lambda_.1} parent=1 // pred_region
      %s12 = ssub.s32 16, 16
      %13 = vsyncadd [#allocation3], %s12
      %s15 = sshll.u32 %s0, 4
      %s16 = int_to_ptr.vmem [resolvable:$true] %s15
      %18 = dma.vmem_to_smem %s16, 16, [#allocation2], [#allocation3]
    $region5: #{_lambda_.1} parent=1 // pred_fallthru
      _
    // Predicated region
    $region6: #{_lambda_.1} parent=1 // pred_check
      _
    $region7: #{_lambda_.1} parent=1 // pred_check_branch
      %20 = sbr.rel (0) target = $region9
    $region8: #{_lambda_.1} parent=1 // pred_region
      _
    $region9: #{_lambda_.1} parent=1 // pred_fallthru
      _
    // Predicated region
    $region10: #{_lambda_.1} parent=1 // pred_check
      _
    $region11: #{_lambda_.1} parent=1 // pred_check_branch
      %22 = sbr.rel (0) target = $region13
    $region12: #{_lambda_.1} parent=1 // pred_region
      _
    $region13: #{_lambda_.1} parent=1 // pred_fallthru
      _
    // Predicated region
    $region14: #{_lambda_.1} parent=1 // pred_check
      _
    $region15: #{_lambda_.1} parent=1 // pred_check_branch
      %24 = sbr.rel (0) target = $region17
    $region16: #{_lambda_.1} parent=1 // pred_region
      %25 = dma.done [#allocation3], 16
    $region17: #{_lambda_.1} parent=1 // pred_fallthru
      _
    %26 = sfence
    %v27 = vld [vmem:[%s1] sm:$0x1]
    %s28 = sld [smem:[#allocation2]]
    %v29 = vstv %s28
    %v30 = vmul.f32 %v27, %v29
    %v31 = vld [vmem:[%s2] sm:$0x1]
    %s32 = sld [smem:[#allocation2 + $0x1]]
    %v33 = vstv %s32
    %v34 = vmul.f32 %v31, %v33
    %v35 = vadd.f32 %v30, %v34
    %36 = vst [vmem:[%s3] sm:$0x1] %v35
    // Predicated region
    $region18: #{_lambda_.1} parent=1 // pred_check
      _
    $region19: #{_lambda_.1} parent=1 // pred_check_branch
      %38 = sbr.rel (0) target = $region21
    $region20: #{_lambda_.1} parent=1 // pred_region
      _
    $region21: #{_lambda_.1} parent=1 // pred_fallthru
      _
    // Predicated region
    $region22: #{_lambda_.1} parent=1 // pred_check
      _
    $region23: #{_lambda_.1} parent=1 // pred_check_branch
      %40 = sbr.rel (0) target = $region25
    $region24: #{_lambda_.1} parent=1 // pred_region
      _
    $region25: #{_lambda_.1} parent=1 // pred_fallthru
      _
    %41 = vsyncpa [#allocation3], 1

</llo_original>
